<compile_context>
chip_gen: v5e
topology: v5e:2x2
jax: 0.10.0
libtpu: 0.0.40
codegen_flags: <defaults>
</compile_context>

<pallas_src>
import jax
import jax.numpy as jnp
from jax.experimental import pallas as pl
from jax.experimental.pallas import tpu as pltpu


# ----------------------------------------------------------------------------- kernel

def _attend(w_ref, q_ref, k_ref, v_ref, mask_ref, out_ref, wgt_ref, *, mask_kind):
    """One batch element per grid step. Everything is 2-D inside.

    w_ref   : (Dq, Dk)        shared bilinear weights (resident across steps)
    q_ref   : (Lq, Dq)        this batch's query rows (pre-flattened in the wrapper)
    k_ref   : (1, Lk, Dk)     this batch's keys
    v_ref   : (1, Lk, Dv)     this batch's values
    mask_ref: None | (1, Lk) int32 | (1, Lq, Lk) int32
    out_ref : (1, Lq, Dv)
    wgt_ref : (1, Lq, Lk)
    """
    q = q_ref[...]                     # (Lq, Dq)
    k = k_ref[0]                       # (Lk, Dk)
    v = v_ref[0]                       # (Lk, Dv)
    w = w_ref[...]                     # (Dq, Dk)

    # Shared projection q @ W: one MXU matmul, f32 accumulation.
    qw = jnp.dot(q, w, preferred_element_type=jnp.float32)          # (Lq, Dk) f32

    # score = (q @ W) @ k^T  -- NT matmul, contraction over Dk, f32 accumulation.
    # (For f32 inputs the astype is a no-op; for bf16 inputs it is the usual
    #  round-to-input-dtype before the second MXU pass.)
    score = jax.lax.dot_general(
        qw.astype(k.dtype), k,
        dimension_numbers=(((1,), (1,)), ((), ())),
        preferred_element_type=jnp.float32)                         # (Lq, Lk) f32

    # masked_fill(~mask, -10000); key-padding masks are broadcast along Lq in-kernel.
    if mask_kind == "key":
        keep = mask_ref[...] != 0                                   # (1, Lk)
        score = jnp.where(keep, score, jnp.float32(-10000.0))
    elif mask_kind == "full":
        keep = mask_ref[0] != 0                                     # (Lq, Lk)
        score = jnp.where(keep, score, jnp.float32(-10000.0))

    # Numerically-stable softmax over the last dim. Exact divide: `weight` is a
    # user-visible output, so no approximate reciprocal here (parity with torch).
    m = jnp.max(score, axis=-1, keepdims=True)
    e = jnp.exp(score - m)
    weight = e / jnp.sum(e, axis=-1, keepdims=True)                 # (Lq, Lk) f32

    # Dropout(p=0) is the identity.
    wgt_ref[0] = weight.astype(wgt_ref.dtype)

    out = jnp.dot(weight.astype(v.dtype), v, preferred_element_type=jnp.float32)
    out_ref[0] = out.astype(out_ref.dtype)


def _kernel_none(w_ref, q_ref, k_ref, v_ref, out_ref, wgt_ref):
    _attend(w_ref, q_ref, k_ref, v_ref, None, out_ref, wgt_ref, mask_kind="none")


def _kernel_key(w_ref, q_ref, k_ref, v_ref, m_ref, out_ref, wgt_ref):
    _attend(w_ref, q_ref, k_ref, v_ref, m_ref, out_ref, wgt_ref, mask_kind="key")


def _kernel_full(w_ref, q_ref, k_ref, v_ref, m_ref, out_ref, wgt_ref):
    _attend(w_ref, q_ref, k_ref, v_ref, m_ref, out_ref, wgt_ref, mask_kind="full")


# ----------------------------------------------------------------------------- wrapper

def bilinear_attention(query, key, value, weights, mask=None, *, weight_dtype=None):
    """query: (B, Lq, Dq), key: (B, Lk, Dk), value: (B, Lk, Dv), weights: (Dq, Dk).
    mask: optional bool, broadcastable to (B, Lq, Lk); key-padding masks of shape
    (B, Lk) or (B, 1, Lk) take a cheap path (no (B, Lq, Lk) broadcast in HBM).
    Returns (weight @ value, weight) -- same as the PyTorch module's forward."""
    B, Lq, Dq = query.shape
    Bk, Lk, Dk = key.shape
    Dv = value.shape[-1]
    assert weights.shape == (Dq, Dk)
    assert Bk == B and value.shape[0] == B and value.shape[1] == Lk

    if weight_dtype is None:
        weight_dtype = query.dtype
    weight_dtype = jnp.dtype(weight_dtype)

    # ---- classify the mask -------------------------------------------------
    mask_kind, mask_arg = "none", None
    if mask is not None:
        mask = jnp.asarray(mask)
        if mask.ndim == 2 and mask.shape == (B, Lk):
            mask_arg = mask.astype(jnp.int32)                          # (B, Lk)
            mask_kind = "key"
        elif (mask.ndim == 3 and mask.shape[-2] == 1 and mask.shape[-1] == Lk
              and mask.shape[0] in (1, B)):
            mask_arg = jnp.broadcast_to(mask[:, 0, :], (B, Lk)).astype(jnp.int32)
            mask_kind = "key"
        else:  # general per-(q, k) mask fallback
            mask_arg = jnp.broadcast_to(mask, (B, Lq, Lk)).astype(jnp.int32)
            mask_kind = "full"

    # ---- wrapper-side layout plumbing (no in-kernel reshapes) ---------------
    q_flat = query.reshape(B * Lq, Dq)

    in_specs = [
        pl.BlockSpec((Dq, Dk), lambda b: (0, 0)),          # weights (shared/resident)
        pl.BlockSpec((Lq, Dq), lambda b: (b, 0)),          # query rows of batch b
        pl.BlockSpec((1, Lk, Dk), lambda b: (b, 0, 0)),    # key
        pl.BlockSpec((1, Lk, Dv), lambda b: (b, 0, 0)),    # value
    ]
    args = [weights, q_flat, key, value]
    if mask_kind == "key":
        in_specs.append(pl.BlockSpec((1, Lk), lambda b: (b, 0)))
        args.append(mask_arg)
        kernel = _kernel_key
    elif mask_kind == "full":
        in_specs.append(pl.BlockSpec((1, Lq, Lk), lambda b: (b, 0, 0)))
        args.append(mask_arg)
        kernel = _kernel_full
    else:
        kernel = _kernel_none

    out_shapes = (
        jax.ShapeDtypeStruct((B, Lq, Dv), query.dtype),    # attended output
        jax.ShapeDtypeStruct((B, Lq, Lk), weight_dtype),   # attention weights
    )
    out_specs = (
        pl.BlockSpec((1, Lq, Dv), lambda b: (b, 0, 0)),
        pl.BlockSpec((1, Lq, Lk), lambda b: (b, 0, 0)),
    )

    # ---- VMEM estimate (blocks double-buffered + f32 softmax intermediates) ---
    isz = query.dtype.itemsize
    blk_bytes = (Dq * Dk * weights.dtype.itemsize
                 + Lq * Dq * isz
                 + Lk * Dk * key.dtype.itemsize
                 + Lk * Dv * value.dtype.itemsize
                 + Lq * Dv * isz
                 + Lq * Lk * weight_dtype.itemsize)
    if mask_kind == "key":
        blk_bytes += Lk * 4
    elif mask_kind == "full":
        blk_bytes += Lq * Lk * 4
    live_f32 = (Lq * Dk + 3 * Lq * Lk + Lq * Dv) * 4       # qw + score/exp/weight + out acc
    vmem_limit = int(min(max(2 * (2 * blk_bytes + live_f32), 4 << 20), 32 << 20))

    return pl.pallas_call(
        kernel,
        out_shape=out_shapes,
        grid=(B,),
        in_specs=in_specs,
        out_specs=out_specs,
        compiler_params=pltpu.CompilerParams(
            dimension_semantics=("parallel",),
            vmem_limit_bytes=vmem_limit),
    )(*args)


# ----------------------------------------------------------------------------- reference

def _reference(query, key, value, weights, mask=None):
    # Plain-JAX mirror of the PyTorch forward. HIGHEST precision so the check is
    # genuine f32-vs-f32 (default TPU einsum precision would otherwise use bf16 passes).
    hi = jax.lax.Precision.HIGHEST
    score = jnp.einsum("bqd,dk,blk->bql", query, weights, key, precision=hi)
    if mask is not None:
        score = jnp.where(mask, score, jnp.float32(-10000.0))
    weight = jax.nn.softmax(score, axis=-1)
    out = jnp.einsum("bql,bld->bqd", weight, value, precision=hi)
    return out, weight


if __name__ == "__main__":
    # Small shapes consistent with the module: batch=2, seq=8, hidden=32.
    B, Lq, Lk = 2, 8, 8
    Dq, Dk, Dv = 32, 32, 32

    root = jax.random.PRNGKey(0)
    kw, kq, kk, kv = jax.random.split(root, 4)

    # nn.init.xavier_uniform_ on weights (query_size, key_size)
    bound = (6.0 / (Dq + Dk)) ** 0.5
    weights = jax.random.uniform(kw, (Dq, Dk), jnp.float32, -bound, bound)

    query = jax.random.normal(kq, (B, Lq, Dq), jnp.float32)
    key = jax.random.normal(kk, (B, Lk, Dk), jnp.float32)
    value = jax.random.normal(kv, (B, Lk, Dv), jnp.float32)

    TOL = dict(atol=2e-3, rtol=2e-3)

    # --- mask-free path (module default) ---
    out, wgt = bilinear_attention(query, key, value, weights, mask=None)
    out, wgt = jax.block_until_ready((out, wgt))
    ref_out, ref_wgt = _reference(query, key, value, weights, mask=None)
    assert jnp.allclose(out, ref_out, **TOL), float(jnp.max(jnp.abs(out - ref_out)))
    assert jnp.allclose(wgt, ref_wgt, **TOL), float(jnp.max(jnp.abs(wgt - ref_wgt)))

    # --- key-padding mask path ((B, 1, Lk) broadcast over Lq) ---
    lengths = jnp.array([8, 5])
    key_mask = (jnp.arange(Lk)[None, None, :] < lengths[:, None, None])   # (B, 1, Lk) bool
    out_m, wgt_m = bilinear_attention(query, key, value, weights, mask=key_mask)
    out_m, wgt_m = jax.block_until_ready((out_m, wgt_m))
    ref_out_m, ref_wgt_m = _reference(query, key, value, weights,
                                      mask=jnp.broadcast_to(key_mask, (B, Lq, Lk)))
    assert jnp.allclose(out_m, ref_out_m, **TOL), float(jnp.max(jnp.abs(out_m - ref_out_m)))
    assert jnp.allclose(wgt_m, ref_wgt_m, **TOL), float(jnp.max(jnp.abs(wgt_m - ref_wgt_m)))

    # --- general (B, Lq, Lk) mask fallback path ---
    full_mask = jax.random.bernoulli(jax.random.PRNGKey(1), 0.7, (B, Lq, Lk))
    full_mask = full_mask.at[:, :, 0].set(True)   # keep at least one valid key per row
    out_f, wgt_f = bilinear_attention(query, key, value, weights, mask=full_mask)
    out_f, wgt_f = jax.block_until_ready((out_f, wgt_f))
    ref_out_f, ref_wgt_f = _reference(query, key, value, weights, mask=full_mask)
    assert jnp.allclose(out_f, ref_out_f, **TOL), float(jnp.max(jnp.abs(out_f - ref_out_f)))
    assert jnp.allclose(wgt_f, ref_wgt_f, **TOL), float(jnp.max(jnp.abs(wgt_f - ref_wgt_f)))

    print("KERNEL_OK")
</pallas_src>

<mosaic_0001>
module attributes {stable_mosaic.version = 11 : i64} {
  func.func @_kernel_none(%arg0: i32, %arg1: memref<32x32xf32, #tpu.memory_space<vmem>>, %arg2: memref<8x32xf32, #tpu.memory_space<vmem>>, %arg3: memref<1x8x32xf32, #tpu.memory_space<vmem>>, %arg4: memref<1x8x32xf32, #tpu.memory_space<vmem>>, %arg5: memref<1x8x32xf32, #tpu.memory_space<vmem>>, %arg6: memref<1x8x8xf32, #tpu.memory_space<vmem>>) attributes {dimension_semantics = [#tpu.dimension_semantics<parallel>], iteration_bounds = array<i64: 2>, scalar_prefetch = 0 : i64, scratch_operands = 0 : i64, tpu.core_type = #tpu.core_type<tc>, window_params = [{pipeline_mode = #tpu.pipeline_mode<synchronous>, transform_indices = @transform_0, window_bounds = array<i64: 32, 32>}, {transform_indices = @transform_1, window_bounds = array<i64: 8, 32>}, {transform_indices = @transform_2, window_bounds = array<i64: 1, 8, 32>}, {transform_indices = @transform_3, window_bounds = array<i64: 1, 8, 32>}, {transform_indices = @transform_4, window_bounds = array<i64: 1, 8, 32>}, {transform_indices = @transform_5, window_bounds = array<i64: 1, 8, 8>}]} {
    %c0 = arith.constant 0 : index
    %c0_0 = arith.constant 0 : index
    %0 = vector.load %arg2[%c0, %c0_0] : memref<8x32xf32, #tpu.memory_space<vmem>>, vector<8x32xf32>
    %c0_1 = arith.constant 0 : index
    %c0_2 = arith.constant 0 : index
    %c0_3 = arith.constant 0 : index
    %1 = vector.load %arg3[%c0_1, %c0_2, %c0_3] : memref<1x8x32xf32, #tpu.memory_space<vmem>>, vector<1x8x32xf32>
    %2 = vector.shape_cast %1 : vector<1x8x32xf32> to vector<8x32xf32>
    %c0_4 = arith.constant 0 : index
    %c0_5 = arith.constant 0 : index
    %c0_6 = arith.constant 0 : index
    %3 = vector.load %arg4[%c0_4, %c0_5, %c0_6] : memref<1x8x32xf32, #tpu.memory_space<vmem>>, vector<1x8x32xf32>
    %4 = vector.shape_cast %3 : vector<1x8x32xf32> to vector<8x32xf32>
    %c0_7 = arith.constant 0 : index
    %c0_8 = arith.constant 0 : index
    %5 = vector.load %arg1[%c0_7, %c0_8] : memref<32x32xf32, #tpu.memory_space<vmem>>, vector<32x32xf32>
    %cst = arith.constant dense<0.000000e+00> : vector<8x32xf32>
    %6 = tpu.matmul %0, %5, %cst {dimension_numbers = #tpu.dot_dimension_numbers<[1], [0], [0], [1], [0, 0, 1, 1], [], []>} : vector<8x32xf32>, vector<32x32xf32>, vector<8x32xf32> -> vector<8x32xf32>
    %cst_9 = arith.constant dense<0.000000e+00> : vector<8x8xf32>
    %7 = tpu.matmul %6, %2, %cst_9 {dimension_numbers = #tpu.dot_dimension_numbers<[1], [1], [0], [0], [0, 0, 1, 0], [], []>} : vector<8x32xf32>, vector<8x32xf32>, vector<8x8xf32> -> vector<8x8xf32>
    %cst_10 = arith.constant dense<0xFF800000> : vector<8xf32>
    %8 = vector.multi_reduction <maximumf>, %7, %cst_10 [1] : vector<8x8xf32> to vector<8xf32>
    %9 = vector.shape_cast %8 : vector<8xf32> to vector<8x1xf32>
    %10 = vector.broadcast %9 : vector<8x1xf32> to vector<8x8xf32>
    %11 = arith.subf %7, %10 : vector<8x8xf32>
    %12 = math.exp %11 : vector<8x8xf32>
    %cst_11 = arith.constant dense<0.000000e+00> : vector<8xf32>
    %13 = vector.multi_reduction <add>, %12, %cst_11 [1] : vector<8x8xf32> to vector<8xf32>
    %14 = vector.shape_cast %13 : vector<8xf32> to vector<8x1xf32>
    %15 = vector.broadcast %14 : vector<8x1xf32> to vector<8x8xf32>
    %16 = arith.divf %12, %15 : vector<8x8xf32>
    %c0_12 = arith.constant 0 : index
    %c0_13 = arith.constant 0 : index
    %c0_14 = arith.constant 0 : index
    %17 = vector.load %arg6[%c0_12, %c0_13, %c0_14] : memref<1x8x8xf32, #tpu.memory_space<vmem>>, vector<1x8x8xf32>
    %18 = vector.shape_cast %17 : vector<1x8x8xf32> to vector<8x8xf32>
    %19 = vector.shape_cast %16 : vector<8x8xf32> to vector<1x8x8xf32>
    tpu.vector_store %arg6[%c0_12, %c0_13, %c0_14], %19 {strides = array<i32>} : memref<1x8x8xf32, #tpu.memory_space<vmem>>, vector<1x8x8xf32>,
    %cst_15 = arith.constant dense<0.000000e+00> : vector<8x32xf32>
    %20 = tpu.matmul %16, %4, %cst_15 {dimension_numbers = #tpu.dot_dimension_numbers<[1], [0], [0], [1], [0, 0, 1, 1], [], []>} : vector<8x8xf32>, vector<8x32xf32>, vector<8x32xf32> -> vector<8x32xf32>
    %c0_16 = arith.constant 0 : index
    %c0_17 = arith.constant 0 : index
    %c0_18 = arith.constant 0 : index
    %21 = vector.load %arg5[%c0_16, %c0_17, %c0_18] : memref<1x8x32xf32, #tpu.memory_space<vmem>>, vector<1x8x32xf32>
    %22 = vector.shape_cast %21 : vector<1x8x32xf32> to vector<8x32xf32>
    %23 = vector.shape_cast %20 : vector<8x32xf32> to vector<1x8x32xf32>
    tpu.vector_store %arg5[%c0_16, %c0_17, %c0_18], %23 {strides = array<i32>} : memref<1x8x32xf32, #tpu.memory_space<vmem>>, vector<1x8x32xf32>,
    return
  }
  func.func @transform_0(%arg0: i32) -> (i32, i32) {
    %c0_i32 = arith.constant 0 : i32
    %c0_i32_0 = arith.constant 0 : i32
    %c0_i32_1 = arith.constant 0 : i32
    return %c0_i32, %c0_i32_0 : i32, i32
  }
  func.func @transform_1(%arg0: i32) -> (i32, i32) {
    %c0_i32 = arith.constant 0 : i32
    %c0_i32_0 = arith.constant 0 : i32
    return %arg0, %c0_i32 : i32, i32
  }
  func.func @transform_2(%arg0: i32) -> (i32, i32, i32) {
    %c0_i32 = arith.constant 0 : i32
    %c0_i32_0 = arith.constant 0 : i32
    %c0_i32_1 = arith.constant 0 : i32
    return %arg0, %c0_i32, %c0_i32_0 : i32, i32, i32
  }
  func.func @transform_3(%arg0: i32) -> (i32, i32, i32) {
    %c0_i32 = arith.constant 0 : i32
    %c0_i32_0 = arith.constant 0 : i32
    %c0_i32_1 = arith.constant 0 : i32
    return %arg0, %c0_i32, %c0_i32_0 : i32, i32, i32
  }
  func.func @transform_4(%arg0: i32) -> (i32, i32, i32) {
    %c0_i32 = arith.constant 0 : i32
    %c0_i32_0 = arith.constant 0 : i32
    %c0_i32_1 = arith.constant 0 : i32
    return %arg0, %c0_i32, %c0_i32_0 : i32, i32, i32
  }
  func.func @transform_5(%arg0: i32) -> (i32, i32, i32) {
    %c0_i32 = arith.constant 0 : i32
    %c0_i32_0 = arith.constant 0 : i32
    %c0_i32_1 = arith.constant 0 : i32
    return %arg0, %c0_i32, %c0_i32_0 : i32, i32, i32
  }
}

</mosaic_0001>

<llo_original>
// kernel: tpu_custom_call.1
$region0: #{tpu_custom_call.1}
  #allocation0 [shape = 'u32[]', space=smem, size = 0x4, offset = 0x4, fixed_abs, tag = 'smem constant byte address 0x4 - core index']
  #allocation1 [shape = 'u32[72,128]{1,0:T(1,128)}', space=vmem, size = 0x9000, scoped, tag = 'internal scratch']
  %s0 = inlined_call_operand.hbm [shape: f32[32,32], index: 0, kind: input, shape index: {}]
  %s1 = inlined_call_operand.hbm [shape: f32[16,32], index: 1, kind: input, shape index: {}]
  %s2 = inlined_call_operand.hbm [shape: f32[2,8,32], index: 2, kind: input, shape index: {}]
  %s3 = inlined_call_operand.hbm [shape: f32[2,8,32], index: 3, kind: input, shape index: {}]
  %s4 = inlined_call_operand.hbm [shape: f32[2,8,32], index: 4, kind: output, shape index: {0}]
  %s5 = inlined_call_operand.hbm [shape: f32[2,8,8], index: 5, kind: output, shape index: {1}]
  %6 = xla_tuple %s4, %s5
  %s7 = sld [smem:[#allocation0]]
  $region73: #{tpu_custom_call.1} parent=0
    _
  %s9 = ssub.s32 1, %s7
  %s10 = scalar_select 0, %s9, %s7
  $region1: #{tpu_custom_call.1} parent=0
    #allocation2 [shape = 'u8[16384]{0}', space=vmem, size = 0x4000, scoped, tag = 'input window, operand 0, single buffered']
    #allocation3 [shape = 's32[2]{0}', space=sflag, size = 0x8, scoped, tag = 'scoped memory for tpu_custom_call.1']
    #allocation4 [shape = 's32[2]{0}', space=sflag, size = 0x8, scoped, tag = 'scoped memory for tpu_custom_call.1']
    #allocation5 [shape = 'u8[8192]{0}', space=vmem, size = 0x2000, scoped, tag = 'input window, operand 1']
    #allocation6 [shape = 's32[2]{0}', space=sflag, size = 0x8, scoped, tag = 'scoped memory for tpu_custom_call.1']
    #allocation7 [shape = 'u8[8192]{0}', space=vmem, size = 0x2000, scoped, tag = 'input window, operand 2']
    #allocation8 [shape = 'u8[8192]{0}', space=vmem, size = 0x2000, scoped, tag = 'input window, operand 3']
    #allocation9 [shape = 's32[2]{0}', space=sflag, size = 0x8, scoped, tag = 'scoped memory for tpu_custom_call.1']
    #allocation10 [shape = 'u8[8192]{0}', space=vmem, size = 0x2000, scoped, tag = 'output window, operand 0']
    #allocation11 [shape = 'u8[8192]{0}', space=vmem, size = 0x2000, scoped, tag = 'output window, operand 1']
    #allocation12 [shape = 's32[2]{0}', space=sflag, size = 0x8, scoped, tag = 'scoped memory for tpu_custom_call.1']
    %11 = vsyncpa [#allocation3], 0
    %12 = vsyncpa [#allocation6], 0
    %s13 = scalar_lea.sflag [#allocation6], 1
    %14 = vsyncpa %s13, 0
    %15 = vsyncpa [#allocation9], 0
    %s16 = scalar_lea.sflag [#allocation9], 1
    %17 = vsyncpa %s16, 0
    %18 = vsyncpa [#allocation4], 0
    %s19 = scalar_lea.sflag [#allocation4], 1
    %20 = vsyncpa %s19, 0
    %21 = vsyncpa [#allocation12], 0
    %s22 = scalar_lea.sflag [#allocation12], 1
    %23 = vsyncpa %s22, 0
    loop: start=0, step=1, limit=4
    $region2: #{tpu_custom_call.1} parent=1 // loop_pre_header
      _
    $region3: #{tpu_custom_call.1} parent=1 // loop_header
      %s25 = sphi 0, %s29
      %p26 = scmp.ge.s32.totalorder %s25, 4
      %s33 = sphi 0, %s33
      %s35 = sphi 0, %s33
      %s36 = sphi 0, %s35
      %s50 = sphi 0, %s36
      %s56 = sphi 0, %s58
      %s59 = sphi 0, %s56
      %s60 = sphi 0, %s59
      %s76 = sphi 0, %s60
      %s82 = sphi 0, %s84
      %s85 = sphi 0, %s82
      %s86 = sphi 0, %s85
      %s102 = sphi 0, %s86
      %s108 = sphi 0, %s110
      %s111 = sphi 0, %s108
      %s112 = sphi 0, %s111
      %s128 = sphi 0, %s112
      %s134 = sphi 0, %s136
      %s137 = sphi 0, %s134
      %s138 = sphi 0, %s137
      %s154 = sphi 0, %s138
      %s160 = sphi 0, %s162
      %s163 = sphi 0, %s160
      %s164 = sphi 0, %s163
      %s180 = sphi 0, %s164
    $region4: #{tpu_custom_call.1} parent=1 // loop_header_branch
      %28 = sbr.rel (%p26) target = $region8
    $region5: #{tpu_custom_call.1} parent=1 // loop_body
      %s30 = ssub.s32 %s25, 1
      %s31 = ssub.s32 %s25, 2
      %s32 = sadd.s32 %s25, 1
      %s34 = sadd.s32 %s33, 1
      %p37 = scmp.eq.s32.totalorder %s25, 1
      %p38 = scmp.ne.s32.totalorder %s33, %s35
      %p39 = scmp.eq.s32.totalorder %s25, 0
      %p40 = por %p38, %p39
      %p41 = scmp.ne.s32.totalorder %s33, %s35
      %p42 = scmp.eq.s32.totalorder %s30, 1
      %p43 = por %p41, %p42
      %p44 = scmp.ne.s32.totalorder %s35, %s36
      %p45 = scmp.eq.s32.totalorder %s30, 0
      %p46 = por %p44, %p45
      %p47 = scmp.ne.s32.totalorder %s35, %s36
      %p48 = scmp.eq.s32.totalorder %s31, 1
      %p49 = por %p47, %p48
      %p51 = scmp.ne.s32.totalorder %s36, %s50
      %p52 = scmp.eq.s32.totalorder %s31, 0
      %p53 = por %p51, %p52
      %s54 = ssub.s32 %s25, %s32
      %p55 = scmp.eq.s32.totalorder %s54, 0
      %s57 = sadd.s32 %s56, 1
      %s58 = scalar_select %p55, %s56, %s57
      %p61 = pneg %p55
      %p62 = scmp.eq.s32.totalorder %s25, 1
      %p63 = por %p61, %p62
      %p64 = scmp.ne.s32.totalorder %s56, %s59
      %p65 = scmp.eq.s32.totalorder %s25, 0
      %p66 = por %p64, %p65
      %p67 = scmp.ne.s32.totalorder %s56, %s59
      %p68 = scmp.eq.s32.totalorder %s30, 1
      %p69 = por %p67, %p68
      %p70 = scmp.ne.s32.totalorder %s59, %s60
      %p71 = scmp.eq.s32.totalorder %s30, 0
      %p72 = por %p70, %p71
      %p73 = scmp.ne.s32.totalorder %s59, %s60
      %p74 = scmp.eq.s32.totalorder %s31, 1
      %p75 = por %p73, %p74
      %p77 = scmp.ne.s32.totalorder %s60, %s76
      %p78 = scmp.eq.s32.totalorder %s31, 0
      %p79 = por %p77, %p78
      %s80 = ssub.s32 %s25, %s32
      %p81 = scmp.eq.s32.totalorder %s80, 0
      %s83 = sadd.s32 %s82, 1
      %s84 = scalar_select %p81, %s82, %s83
      %p87 = pneg %p81
      %p88 = scmp.eq.s32.totalorder %s25, 1
      %p89 = por %p87, %p88
      %p90 = scmp.ne.s32.totalorder %s82, %s85
      %p91 = scmp.eq.s32.totalorder %s25, 0
      %p92 = por %p90, %p91
      %p93 = scmp.ne.s32.totalorder %s82, %s85
      %p94 = scmp.eq.s32.totalorder %s30, 1
      %p95 = por %p93, %p94
      %p96 = scmp.ne.s32.totalorder %s85, %s86
      %p97 = scmp.eq.s32.totalorder %s30, 0
      %p98 = por %p96, %p97
      %p99 = scmp.ne.s32.totalorder %s85, %s86
      %p100 = scmp.eq.s32.totalorder %s31, 1
      %p101 = por %p99, %p100
      %p103 = scmp.ne.s32.totalorder %s86, %s102
      %p104 = scmp.eq.s32.totalorder %s31, 0
      %p105 = por %p103, %p104
      %s106 = ssub.s32 %s25, %s32
      %p107 = scmp.eq.s32.totalorder %s106, 0
      %s109 = sadd.s32 %s108, 1
      %s110 = scalar_select %p107, %s108, %s109
      %p113 = pneg %p107
      %p114 = scmp.eq.s32.totalorder %s25, 1
      %p115 = por %p113, %p114
      %p116 = scmp.ne.s32.totalorder %s108, %s111
      %p117 = scmp.eq.s32.totalorder %s25, 0
      %p118 = por %p116, %p117
      %p119 = scmp.ne.s32.totalorder %s108, %s111
      %p120 = scmp.eq.s32.totalorder %s30, 1
      %p121 = por %p119, %p120
      %p122 = scmp.ne.s32.totalorder %s111, %s112
      %p123 = scmp.eq.s32.totalorder %s30, 0
      %p124 = por %p122, %p123
      %p125 = scmp.ne.s32.totalorder %s111, %s112
      %p126 = scmp.eq.s32.totalorder %s31, 1
      %p127 = por %p125, %p126
      %p129 = scmp.ne.s32.totalorder %s112, %s128
      %p130 = scmp.eq.s32.totalorder %s31, 0
      %p131 = por %p129, %p130
      %s132 = ssub.s32 %s25, %s32
      %p133 = scmp.eq.s32.totalorder %s132, 0
      %s135 = sadd.s32 %s134, 1
      %s136 = scalar_select %p133, %s134, %s135
      %p139 = pneg %p133
      %p140 = scmp.eq.s32.totalorder %s25, 1
      %p141 = por %p139, %p140
      %p142 = scmp.ne.s32.totalorder %s134, %s137
      %p143 = scmp.eq.s32.totalorder %s25, 0
      %p144 = por %p142, %p143
      %p145 = scmp.ne.s32.totalorder %s134, %s137
      %p146 = scmp.eq.s32.totalorder %s30, 1
      %p147 = por %p145, %p146
      %p148 = scmp.ne.s32.totalorder %s137, %s138
      %p149 = scmp.eq.s32.totalorder %s30, 0
      %p150 = por %p148, %p149
      %p151 = scmp.ne.s32.totalorder %s137, %s138
      %p152 = scmp.eq.s32.totalorder %s31, 1
      %p153 = por %p151, %p152
      %p155 = scmp.ne.s32.totalorder %s138, %s154
      %p156 = scmp.eq.s32.totalorder %s31, 0
      %p157 = por %p155, %p156
      %s158 = ssub.s32 %s25, %s32
      %p159 = scmp.eq.s32.totalorder %s158, 0
      %s161 = sadd.s32 %s160, 1
      %s162 = scalar_select %p159, %s160, %s161
      %p165 = pneg %p159
      %p166 = scmp.eq.s32.totalorder %s25, 1
      %p167 = por %p165, %p166
      %p168 = scmp.ne.s32.totalorder %s160, %s163
      %p169 = scmp.eq.s32.totalorder %s25, 0
      %p170 = por %p168, %p169
      %p171 = scmp.ne.s32.totalorder %s160, %s163
      %p172 = scmp.eq.s32.totalorder %s30, 1
      %p173 = por %p171, %p172
      %p174 = scmp.ne.s32.totalorder %s163, %s164
      %p175 = scmp.eq.s32.totalorder %s30, 0
      %p176 = por %p174, %p175
      %p177 = scmp.ne.s32.totalorder %s163, %s164
      %p178 = scmp.eq.s32.totalorder %s31, 1
      %p179 = por %p177, %p178
      %p181 = scmp.ne.s32.totalorder %s164, %s180
      %p182 = scmp.eq.s32.totalorder %s31, 0
      %p183 = por %p181, %p182
      %p184 = scmp.le.s32.totalorder 1, %s25
      %p185 = scmp.lt.s32.totalorder %s25, 3
      %p186 = pnand %p184, %p185
      %p187 = pneg %p186
      // Predicated region
      $region9: #{tpu_custom_call.1} parent=5 // pred_check
        _
      $region10: #{tpu_custom_call.1} parent=5 // pred_check_branch
        %189 = sbr.rel (%p186) target = $region12
      $region11: #{tpu_custom_call.1} parent=5 // pred_region
        %s190 = ssub.s32 %s25, 1
        // Predicated region
        $region13: #{tpu_custom_call.1} parent=11 // pred_check
          %p191 = pneg %p46
        $region14: #{tpu_custom_call.1} parent=11 // pred_check_branch
          %193 = sbr.rel (%p191) target = $region16
        $region15: #{tpu_custom_call.1} parent=11 // pred_region
          %195 = vsyncadd [#allocation3], 0
          %s196 = sshll.u32 %s0, 4
          %s197 = int_to_ptr.hbm [resolvable:$true] %s196
          %s198 = sshll.u32 [#allocation2], 4
          %s199 = int_to_ptr.vmem [resolvable:$true] %s198
          %204 = dma.hbm_to_vmem [thread:$0]  %s197, 512, %s199, [#allocation3], 128, 128, 8
        $region16: #{tpu_custom_call.1} parent=11 // pred_fallthru
          _
      $region12: #{tpu_custom_call.1} parent=5 // pred_fallthru
        _
      %p205 = scmp.lt.s32.totalorder %s25, 2
      // Predicated region
      $region17: #{tpu_custom_call.1} parent=5 // pred_check
        %p206 = pneg %p205
      $region18: #{tpu_custom_call.1} parent=5 // pred_check_branch
        %208 = sbr.rel (%p206) target = $region20
      $region19: #{tpu_custom_call.1} parent=5 // pred_region
        // Predicated region
        $region21: #{tpu_custom_call.1} parent=19 // pred_check
          %p209 = pneg %p66
        $region22: #{tpu_custom_call.1} parent=19 // pred_check_branch
          %211 = sbr.rel (%p209) target = $region24
        $region23: #{tpu_custom_call.1} parent=19 // pred_region
          %s212 = sand.u32 %s25, 1
          %s213 = scalar_lea.sflag [#allocation6], %s212
          %s214 = sand.u32 %s56, 1
          %s215 = smul.addr %s214, 8
          %s216 = scalar_lea.vmem [#allocation5], %s215
          %218 = vsyncadd %s213, 0
          %s219 = smul.addr %s25, 8
          %s220 = scalar_lea.hbm %s1, %s219
          %s222 = sshll.u32 %s220, 4
          %s223 = int_to_ptr.hbm [resolvable:$true] %s222
          %s224 = sshll.u32 %s216, 4
          %s225 = int_to_ptr.vmem [resolvable:$true] %s224
          %227 = dma.hbm_to_vmem [thread:$0]  %s223, 128, %s225, %s213
        $region24: #{tpu_custom_call.1} parent=19 // pred_fallthru
          _
        // Predicated region
        $region25: #{tpu_custom_call.1} parent=19 // pred_check
          %p228 = pneg %p92
        $region26: #{tpu_custom_call.1} parent=19 // pred_check_branch
          %230 = sbr.rel (%p228) target = $region28
        $region27: #{tpu_custom_call.1} parent=19 // pred_region
          %s231 = sand.u32 %s25, 1
          %s232 = scalar_lea.sflag [#allocation6], %s231
          %s233 = sand.u32 %s82, 1
          %s234 = smul.addr %s233, 8
          %s235 = scalar_lea.vmem [#allocation7], %s234
          %237 = vsyncadd %s232, 0
          %s238 = smul.addr %s25, 8
          %s239 = scalar_lea.hbm %s2, %s238
          %s241 = sshll.u32 %s239, 4
          %s242 = int_to_ptr.hbm [resolvable:$true] %s241
          %s243 = sshll.u32 %s235, 4
          %s244 = int_to_ptr.vmem [resolvable:$true] %s243
          %246 = dma.hbm_to_vmem [thread:$0]  %s242, 128, %s244, %s232
        $region28: #{tpu_custom_call.1} parent=19 // pred_fallthru
          _
        // Predicated region
        $region29: #{tpu_custom_call.1} parent=19 // pred_check
          %p247 = pneg %p118
        $region30: #{tpu_custom_call.1} parent=19 // pred_check_branch
          %249 = sbr.rel (%p247) target = $region32
        $region31: #{tpu_custom_call.1} parent=19 // pred_region
          %s250 = sand.u32 %s108, 1
          %s251 = scalar_lea.sflag [#allocation9], %s250
          %s252 = sand.u32 %s108, 1
          %s253 = smul.addr %s252, 8
          %s254 = scalar_lea.vmem [#allocation8], %s253
          %256 = vsyncadd %s251, 0
          %s257 = smul.addr %s25, 8
          %s258 = scalar_lea.hbm %s3, %s257
          %s260 = sshll.u32 %s258, 4
          %s261 = int_to_ptr.hbm [resolvable:$true] %s260
          %s262 = sshll.u32 %s254, 4
          %s263 = int_to_ptr.vmem [resolvable:$true] %s262
          %265 = dma.hbm_to_vmem [thread:$0]  %s261, 128, %s263, %s251
        $region32: #{tpu_custom_call.1} parent=19 // pred_fallthru
          _
      $region20: #{tpu_custom_call.1} parent=5 // pred_fallthru
        _
      %p266 = scmp.le.s32.totalorder 1, %s25
      %p267 = scmp.lt.s32.totalorder %s25, 3
      %p268 = pnand %p266, %p267
      %p269 = pneg %p268
      // Predicated region
      $region33: #{tpu_custom_call.1} parent=5 // pred_check
        _
      $region34: #{tpu_custom_call.1} parent=5 // pred_check_branch
        %271 = sbr.rel (%p268) target = $region36
      $region35: #{tpu_custom_call.1} parent=5 // pred_region
        %s272 = ssub.s32 %s25, 1
        // Predicated region
        $region37: #{tpu_custom_call.1} parent=35 // pred_check
          %p273 = pneg %p46
        $region38: #{tpu_custom_call.1} parent=35 // pred_check_branch
          %275 = sbr.rel (%p273) target = $region40
        $region39: #{tpu_custom_call.1} parent=35 // pred_region
          %277 = dma.done [#allocation3], 512
        $region40: #{tpu_custom_call.1} parent=35 // pred_fallthru
          _
        %s278 = sand.u32 %s30, 1
        %s279 = scalar_lea.sflag [#allocation6], %s278
        %s280 = sand.u32 %s59, 1
        %s281 = smul.addr %s280, 8
        %s282 = scalar_lea.vmem [#allocation5], %s281
        // Predicated region
        $region41: #{tpu_custom_call.1} parent=35 // pred_check
          %p283 = pneg %p72
        $region42: #{tpu_custom_call.1} parent=35 // pred_check_branch
          %285 = sbr.rel (%p283) target = $region44
        $region43: #{tpu_custom_call.1} parent=35 // pred_region
          %287 = dma.done %s279, 128
        $region44: #{tpu_custom_call.1} parent=35 // pred_fallthru
          _
        %s288 = sand.u32 %s30, 1
        %s289 = scalar_lea.sflag [#allocation6], %s288
        %s290 = sand.u32 %s85, 1
        %s291 = smul.addr %s290, 8
        %s292 = scalar_lea.vmem [#allocation7], %s291
        // Predicated region
        $region45: #{tpu_custom_call.1} parent=35 // pred_check
          %p293 = pneg %p98
        $region46: #{tpu_custom_call.1} parent=35 // pred_check_branch
          %295 = sbr.rel (%p293) target = $region48
        $region47: #{tpu_custom_call.1} parent=35 // pred_region
          %297 = dma.done %s289, 128
        $region48: #{tpu_custom_call.1} parent=35 // pred_fallthru
          _
        %s298 = sand.u32 %s111, 1
        %s299 = scalar_lea.sflag [#allocation9], %s298
        %s300 = sand.u32 %s111, 1
        %s301 = smul.addr %s300, 8
        %s302 = scalar_lea.vmem [#allocation8], %s301
        // Predicated region
        $region49: #{tpu_custom_call.1} parent=35 // pred_check
          %p303 = pneg %p124
        $region50: #{tpu_custom_call.1} parent=35 // pred_check_branch
          %305 = sbr.rel (%p303) target = $region52
        $region51: #{tpu_custom_call.1} parent=35 // pred_region
          %307 = dma.done %s299, 128
        $region52: #{tpu_custom_call.1} parent=35 // pred_fallthru
          _
        %p308 = pneg %p46
        %p309 = pneg %p43
        %s310 = sand.u32 %s30, 1
        %s311 = scalar_lea.sflag [#allocation6], %s310
        %s312 = sand.u32 %s59, 1
        %s313 = smul.addr %s312, 8
        %s314 = scalar_lea.vmem [#allocation5], %s313
        %p315 = pneg %p72
        %p316 = pneg %p69
        %s317 = sand.u32 %s30, 1
        %s318 = scalar_lea.sflag [#allocation6], %s317
        %s319 = sand.u32 %s85, 1
        %s320 = smul.addr %s319, 8
        %s321 = scalar_lea.vmem [#allocation7], %s320
        %p322 = pneg %p98
        %p323 = pneg %p95
        %s324 = sand.u32 %s111, 1
        %s325 = scalar_lea.sflag [#allocation9], %s324
        %s326 = sand.u32 %s111, 1
        %s327 = smul.addr %s326, 8
        %s328 = scalar_lea.vmem [#allocation8], %s327
        %p329 = pneg %p124
        %p330 = pneg %p121
        %p331 = pneg %p150
        %p332 = pneg %p147
        %s333 = sand.u32 %s137, 1
        %s334 = scalar_lea.sflag [#allocation4], %s333
        %s335 = sand.u32 %s137, 1
        %s336 = smul.addr %s335, 8
        %s337 = scalar_lea.vmem [#allocation10], %s336
        %p338 = pneg %p176
        %p339 = pneg %p173
        %s340 = sand.u32 %s163, 1
        %s341 = scalar_lea.sflag [#allocation12], %s340
        %s342 = sand.u32 %s163, 1
        %s343 = smul.addr %s342, 8
        %s344 = scalar_lea.vmem [#allocation11], %s343
        %v345 = vld [vmem:[%s282] sm:$0xff]
        %v346 = vld [vmem:[%s292] sm:$0xff]
        %v347 = vld [vmem:[%s302] sm:$0xff]
        %v348 = vld [vmem:[#allocation2] sm:$0xff]
        %v349 = vld [vmem:[#allocation2 + $0x8] sm:$0xff]
        %v350 = vld [vmem:[#allocation2 + $0x10] sm:$0xff]
        %v351 = vld [vmem:[#allocation2 + $0x18] sm:$0xff]
        %vm352 = vcmask 261120
        %v354 = vsel %vm352, %v345, 0
        %356 = vmatpush.msra.mxu0 0.0
        %357 = vmatpush.msra.mxu0 0.0
        %358 = vmatpush.msra.mxu0 0.0
        %359 = vmatpush.msra.mxu0 0.0
        %360 = vmatpush.msra.mxu0 0.0
        %361 = vmatpush.msra.mxu0 0.0
        %362 = vmatpush.msra.mxu0 0.0
        %363 = vmatpush.msra.mxu0 0.0
        %364 = vmatpush.msra.mxu0 0.0
        %365 = vmatpush.msra.mxu0 0.0
        %366 = vmatpush.msra.mxu0 0.0
        %367 = vmatpush.msra.mxu0 0.0
        %368 = vmatpush.msra.mxu0 %v351
        %369 = vmatpush.msra.mxu0 %v350
        %370 = vmatpush.msra.mxu0 %v349
        %371 = vmatpush.msra.mxu0 %v348
        %372 = vmatmul.f32.gmra.mxu0 %v354
        %v373 = vpop.f32.mrf.mxu0
        %v374 = vadd.f32 0.0, %v373
        %375 = vdwg.mxu0
        %v377 = vsel %vm352, %v374, 0
        %v380 = vsel %vm352, %v346, 0
        %382 = vmatpush.xpose.msra.mxu0 0.0
        %383 = vmatpush.xpose.msra.mxu0 0.0
        %384 = vmatpush.xpose.msra.mxu0 0.0
        %385 = vmatpush.xpose.msra.mxu0 0.0
        %386 = vmatpush.xpose.msra.mxu0 0.0
        %387 = vmatpush.xpose.msra.mxu0 0.0
        %388 = vmatpush.xpose.msra.mxu0 0.0
        %389 = vmatpush.xpose.msra.mxu0 0.0
        %390 = vmatpush.xpose.msra.mxu0 0.0
        %391 = vmatpush.xpose.msra.mxu0 0.0
        %392 = vmatpush.xpose.msra.mxu0 0.0
        %393 = vmatpush.xpose.msra.mxu0 0.0
        %394 = vmatpush.xpose.msra.mxu0 0.0
        %395 = vmatpush.xpose.msra.mxu0 0.0
        %396 = vmatpush.xpose.msra.mxu0 0.0
        %397 = vmatpush.xpose.msra.mxu0 %v380
        %398 = vmatmul.f32.gmra.mxu0 %v377
        %v399 = vpop.f32.mrf.mxu0
        %v400 = vadd.f32 0.0, %v399
        %401 = vdwg.mxu0
        %vm402 = vcmask 64512
        %v403 = vsel %vm402, %v400, -inf
        %404 = vmax.xlane.f32.xlu0 %v403
        %v405 = vpop.xlane.xlu0 %404
        %v406 = vsub.f32 %v400, %v405
        %v407 = vmul.f32 %v406, 1.442695
        %v408 = vpow.pop %v407
        %v409 = vsel %vm402, %v408, 0.0
        %410 = vadd.xlane.f32.xlu0 %v409
        %v411 = vpop.xlane.xlu0 %410
        %v412 = vrcp.pop %v411
        %v413 = vmul.f32 %v411, %v412
        %v414 = vsub.f32 1.0, %v413
        %v415 = vmul.f32 %v412, %v414
        %v416 = vadd.f32 %v412, %v415
        %vm417 = vweird.f32 %v411
        %vm418 = vweird.f32 %v412
        %vm419 = vmor %vm417, %vm418
        %v420 = vsel %vm419, %v412, %v416
        %v421 = vand.u32 2147483647, %v411
        %vm422 = vcmp.eq.f32.partialorder %v421, 8.507059e+37
        %v423 = vand.u32 %v411, 2147483648
        %v424 = vor.u32 1.1754944e-38, %v423
        %v425 = vsel %vm422, %v424, %v420
        %v426 = vmul.f32 %v408, %v425
        %427 = vst.msk [vmem:[%s344] sm:$0xff] %vm402, %v426
        %v429 = vsel %vm402, %v426, 0
        %431 = vmatpush.msra.mxu0 0.0
        %432 = vmatpush.msra.mxu0 0.0
        %433 = vmatpush.msra.mxu0 0.0
        %434 = vmatpush.msra.mxu0 0.0
        %435 = vmatpush.msra.mxu0 0.0
        %436 = vmatpush.msra.mxu0 0.0
        %437 = vmatpush.msra.mxu0 0.0
        %438 = vmatpush.msra.mxu0 0.0
        %439 = vmatpush.msra.mxu0 0.0
        %440 = vmatpush.msra.mxu0 0.0
        %441 = vmatpush.msra.mxu0 0.0
        %442 = vmatpush.msra.mxu0 0.0
        %443 = vmatpush.msra.mxu0 0.0
        %444 = vmatpush.msra.mxu0 0.0
        %445 = vmatpush.msra.mxu0 0.0
        %446 = vmatpush.msra.mxu0 %v347
        %447 = vmatmul.f32.gmra.mxu0 %v429
        %v448 = vpop.f32.mrf.mxu0
        %v449 = vadd.f32 0.0, %v448
        %450 = vdwg.mxu0
        %451 = vst.msk [vmem:[%s337] sm:$0xff] %vm352, %v449
        %s452 = sand.u32 %s137, 1
        %s453 = scalar_lea.sflag [#allocation4], %s452
        %s454 = sand.u32 %s137, 1
        %s455 = smul.addr %s454, 8
        %s456 = scalar_lea.vmem [#allocation10], %s455
        %s457 = sand.u32 %s163, 1
        %s458 = scalar_lea.sflag [#allocation12], %s457
        %s459 = sand.u32 %s163, 1
        %s460 = smul.addr %s459, 8
        %s461 = scalar_lea.vmem [#allocation11], %s460
        // Predicated region
        $region53: #{tpu_custom_call.1} parent=35 // pred_check
          %p462 = pneg %p147
        $region54: #{tpu_custom_call.1} parent=35 // pred_check_branch
          %464 = sbr.rel (%p462) target = $region56
        $region55: #{tpu_custom_call.1} parent=35 // pred_region
          %466 = vsyncadd %s453, 0
          %s467 = smul.addr %s30, 8
          %s468 = scalar_lea.hbm %s4, %s467
          %s470 = sshll.u32 %s456, 4
          %s471 = int_to_ptr.vmem [resolvable:$true] %s470
          %s472 = sshll.u32 %s468, 4
          %s473 = int_to_ptr.hbm [resolvable:$true] %s472
          %475 = dma.vmem_to_hbm [thread:$0]  %s471, 128, %s473, %s453
        $region56: #{tpu_custom_call.1} parent=35 // pred_fallthru
          _
        // Predicated region
        $region57: #{tpu_custom_call.1} parent=35 // pred_check
          %p476 = pneg %p173
        $region58: #{tpu_custom_call.1} parent=35 // pred_check_branch
          %478 = sbr.rel (%p476) target = $region60
        $region59: #{tpu_custom_call.1} parent=35 // pred_region
          %480 = vsyncadd %s458, 0
          %s481 = smul.addr %s30, 8
          %s482 = scalar_lea.hbm %s5, %s481
          %s484 = sshll.u32 %s461, 4
          %s485 = int_to_ptr.vmem [resolvable:$true] %s484
          %s486 = sshll.u32 %s482, 4
          %s487 = int_to_ptr.hbm [resolvable:$true] %s486
          %489 = dma.vmem_to_hbm [thread:$0]  %s485, 128, %s487, %s458
        $region60: #{tpu_custom_call.1} parent=35 // pred_fallthru
          _
      $region36: #{tpu_custom_call.1} parent=5 // pred_fallthru
        _
      %p490 = scmp.le.s32.totalorder 2, %s25
      // Predicated region
      $region61: #{tpu_custom_call.1} parent=5 // pred_check
        %p491 = pneg %p490
      $region62: #{tpu_custom_call.1} parent=5 // pred_check_branch
        %493 = sbr.rel (%p491) target = $region64
      $region63: #{tpu_custom_call.1} parent=5 // pred_region
        %s494 = ssub.s32 %s25, 2
        // Predicated region
        $region65: #{tpu_custom_call.1} parent=63 // pred_check
          %p495 = pneg %p153
        $region66: #{tpu_custom_call.1} parent=63 // pred_check_branch
          %497 = sbr.rel (%p495) target = $region68
        $region67: #{tpu_custom_call.1} parent=63 // pred_region
          %s498 = sand.u32 %s138, 1
          %s499 = scalar_lea.sflag [#allocation4], %s498
          %s500 = sand.u32 %s138, 1
          %s501 = smul.addr %s500, 8
          %s502 = scalar_lea.vmem [#allocation10], %s501
          %504 = dma.done %s499, 128
        $region68: #{tpu_custom_call.1} parent=63 // pred_fallthru
          _
        // Predicated region
        $region69: #{tpu_custom_call.1} parent=63 // pred_check
          %p505 = pneg %p179
        $region70: #{tpu_custom_call.1} parent=63 // pred_check_branch
          %507 = sbr.rel (%p505) target = $region72
        $region71: #{tpu_custom_call.1} parent=63 // pred_region
          %s508 = sand.u32 %s164, 1
          %s509 = scalar_lea.sflag [#allocation12], %s508
          %s510 = sand.u32 %s164, 1
          %s511 = smul.addr %s510, 8
          %s512 = scalar_lea.vmem [#allocation11], %s511
          %514 = dma.done %s509, 128
        $region72: #{tpu_custom_call.1} parent=63 // pred_fallthru
          _
      $region64: #{tpu_custom_call.1} parent=5 // pred_fallthru
        _
    $region6: #{tpu_custom_call.1} parent=1 // loop_footer
      %s29 = sadd.s32 1, %s25
    $region7: #{tpu_custom_call.1} parent=1 // loop_footer_branch
      %24 = sbr.rel target = $region3
    $region8: #{tpu_custom_call.1} parent=1 // loop_exit
      _
    %515 = vsyncpa [#allocation3], 1
    %s516 = scalar_lea.sflag [#allocation3], 1
    %517 = vsyncpa %s516, 1
    %518 = vsyncpa [#allocation6], 1
    %s519 = scalar_lea.sflag [#allocation6], 1
    %520 = vsyncpa %s519, 1
    %521 = vsyncpa [#allocation9], 1
    %s522 = scalar_lea.sflag [#allocation9], 1
    %523 = vsyncpa %s522, 1
    %524 = vsyncpa [#allocation4], 1
    %s525 = scalar_lea.sflag [#allocation4], 1
    %526 = vsyncpa %s525, 1
    %527 = vsyncpa [#allocation12], 1
    %s528 = scalar_lea.sflag [#allocation12], 1
    %529 = vsyncpa %s528, 1

</llo_original>
